<compile_context>
chip_gen: v7x
topology: tpu7x:2x2x1
jax: 0.10.0
libtpu: 0.0.40
codegen_flags: <defaults>
</compile_context>

<pallas_src>
import functools

import jax
import jax.numpy as jnp
from jax import lax
from jax.experimental import pallas as pl
from jax.experimental.pallas import tpu as pltpu

_NEG_INF = -1e9  # lane-padding value for logits (exp underflows to 0)


def _round_up(x, m):
    return (x + m - 1) // m * m


def _pairwise_smooth_loss_kernel(
    logits_ref,   # VMEM (tile, V_pad) f32
    gath_ref,     # VMEM (tile, V_pad) f32  : matric[forth, tgt, :] rows (lane-padded w/ 0)
    aux_ref,      # VMEM (tile, 3)     f32  : [:,0]=target, [:,1]=smoothing, [:,2]=keep
    loss_ref,     # out  (8, V_pad)    f32  : per-core partial-sum accumulator
):
    j = pl.program_id(1)
    tile, vpad = logits_ref.shape

    @pl.when(j == 0)
    def _():
        loss_ref[...] = jnp.zeros_like(loss_ref)

    # --- log_softmax over the lane-padded vocab axis --------------------------
    logits = logits_ref[...]                                   # (tile, V_pad)
    m = jnp.max(logits, axis=-1, keepdims=True)
    z = logits - m
    lse = jnp.log(jnp.sum(jnp.exp(z), axis=-1, keepdims=True))
    log_prob = z - lse                                         # (tile, V_pad)

    # Target round-trips through f32 (exact for vocab indices < 2^24).
    tgt_i = aux_ref[:, 0:1].astype(jnp.int32)                  # (tile, 1)
    smooth = aux_ref[:, 1:2]                                   # (tile, 1)
    keep = aux_ref[:, 2:3]                                     # (tile, 1) in {0,1}

    # --- weight construction + scatter_(-1, target, src) as one-hot select ----
    weight = smooth * gath_ref[...]                            # (tile, V_pad)
    src = 1.0 - jnp.sum(weight, axis=-1, keepdims=True)        # (tile, 1)
    vcols = lax.broadcasted_iota(jnp.int32, (tile, vpad), 1)
    weight = jnp.where(vcols == tgt_i, src, weight)

    # keep==0 zeroes ignored / tail rows; padded lanes have weight exactly 0,
    # so their (finite, large-negative) log_prob contributes nothing.
    contrib = (-keep) * weight * log_prob                      # (tile, V_pad)

    # --- fold tile rows onto 8 sublanes (tile-aligned vreg adds); the single
    #     cross-lane scalar reduction happens once, in the JAX wrapper. --------
    part = contrib.reshape(tile // 8, 8, vpad).sum(axis=0)     # (8, V_pad)
    loss_ref[...] = loss_ref[...] + part


def pairwise_weight_smooth_loss(
    logits,           # (B, T, V) f32
    target,           # (B, T)    i32
    labels_lengths,   # (B,)      lengths of `labels` (host-side len(), see TODO)
    matric,           # (V, V, V) f32 (already sliced [:-1,:-1,:-1])
    *,
    ignore_index,
    alpha,
    normalize_length=True,
    tile=1024,
    num_core_splits=1,   # set to 2 on v7x (2 TensorCores); 1 on v5e/v6e
):
    B, T, V = logits.shape
    N = B * T
    V_pad = _round_up(V, 128)
    NC = max(1, int(num_core_splits))

    # Row tile: as large as the row count allows, clamped so the two streamed
    # (tile, V_pad) inputs (double-buffered) stay within a v7x-safe VMEM budget.
    vmem_budget = 24 << 20
    max_tile = max(8, (vmem_budget // (4 * 4 * V_pad)) // 8 * 8)
    tile = max(8, min(_round_up(int(tile), 8), max_tile,
                      _round_up(int(pl.cdiv(N, NC)), 8)))
    S = int(pl.cdiv(N, NC * tile))          # steps per core
    N_pad = NC * S * tile

    # forth_target[:, 1:] = target[:, :-1]; forth_target[:, 0] = 0
    forth = jnp.concatenate(
        [jnp.zeros((B, 1), target.dtype), target[:, :-1]], axis=1)

    tgt_flat = target.reshape(N).astype(jnp.int32)
    forth_flat = forth.reshape(N).astype(jnp.int32)

    # smoothing = 1 - (1 - alpha)^(1/length), length = len(labels)+1, per batch,
    # repeated over time.
    length = labels_lengths.astype(jnp.float32) + 1.0
    smoothing = 1.0 - jnp.power(1.0 - alpha, 1.0 / length)          # (B,)
    smoothing = jnp.repeat(smoothing[:, None], T, axis=1).reshape(N)

    ignore = tgt_flat == ignore_index
    keep = jnp.logical_not(ignore).astype(jnp.float32)              # (N,)

    # Coalesced wrapper-side gather of matric[forth, tgt, :] (one XLA gather
    # instead of ~2N tiny in-kernel DMAs); result streams through BlockSpec.
    matric_flat = matric.reshape(V * V, V).astype(jnp.float32)
    idx = jnp.clip(forth_flat * V + tgt_flat, 0, V * V - 1)
    gath = jnp.take(matric_flat, idx, axis=0)                       # (N, V)

    logits_flat = logits.reshape(N, V).astype(jnp.float32)

    pad_rows = N_pad - N
    pad_cols = V_pad - V
    if pad_rows or pad_cols:
        logits_p = jnp.pad(logits_flat, ((0, pad_rows), (0, pad_cols)),
                           constant_values=_NEG_INF)
        gath_p = jnp.pad(gath, ((0, pad_rows), (0, pad_cols)))
    else:
        logits_p, gath_p = logits_flat, gath

    aux = jnp.stack(
        [tgt_flat.astype(jnp.float32), smoothing.astype(jnp.float32), keep],
        axis=1)                                                     # (N, 3)
    if pad_rows:
        aux = jnp.pad(aux, ((0, pad_rows), (0, 0)))                 # keep=0 on tail

    # VMEM budget: double-buffered logits + gathered rows + aux + output block.
    vmem_bytes = 4 * (2 * 2 * tile * V_pad + 2 * tile * 3 + 2 * 8 * V_pad)
    vmem_limit = int(min(max(2 * vmem_bytes, 16 << 20), 48 << 20))

    loss_parts = pl.pallas_call(
        _pairwise_smooth_loss_kernel,
        out_shape=jax.ShapeDtypeStruct((NC, 8, V_pad), jnp.float32),
        grid_spec=pltpu.PrefetchScalarGridSpec(
            num_scalar_prefetch=0,
            grid=(NC, S),
            in_specs=[
                pl.BlockSpec((tile, V_pad), lambda i, j: (i * S + j, 0)),
                pl.BlockSpec((tile, V_pad), lambda i, j: (i * S + j, 0)),
                pl.BlockSpec((tile, 3), lambda i, j: (i * S + j, 0)),
            ],
            out_specs=pl.BlockSpec((None, 8, V_pad), lambda i, j: (i, 0, 0)),
        ),
        compiler_params=pltpu.CompilerParams(
            dimension_semantics=("parallel", "arbitrary"),
            vmem_limit_bytes=vmem_limit),
    )(logits_p, gath_p, aux)

    total_loss = jnp.sum(loss_parts)
    total_ignored = jnp.sum(ignore).astype(jnp.float32)
    # NOTE: matches the PyTorch module exactly — normalize_length=True divides
    # by the number of IGNORED (padding) positions (and, like the original,
    # would divide by zero if the batch contains no padding).
    denom = total_ignored if normalize_length else jnp.float32(B)
    return total_loss / denom


def reference_loss(logits, target, labels_lengths, matric, *, ignore_index,
                   alpha, normalize_length=True):
    """Pure-JAX transcription of the PyTorch forward, for verification."""
    B, T, V = logits.shape
    forth = jnp.concatenate(
        [jnp.zeros((B, 1), target.dtype), target[:, :-1]], axis=1).reshape(-1)
    tgt = target.reshape(-1)
    ignore = tgt == ignore_index
    total = jnp.sum(ignore).astype(jnp.float32)
    log_prob = jax.nn.log_softmax(logits.reshape(-1, V), axis=-1)
    length = labels_lengths.astype(jnp.float32) + 1.0
    smoothing = 1.0 - jnp.power(1.0 - alpha, 1.0 / length)
    smoothing = jnp.repeat(smoothing[:, None], T, axis=1).reshape(-1)
    weight = smoothing[:, None] * matric[forth, tgt, :]
    src = 1.0 - weight.sum(-1)
    onehot = jax.nn.one_hot(tgt, V, dtype=jnp.bool_)
    weight = jnp.where(onehot, src[:, None], weight)
    denom = total if normalize_length else jnp.float32(B)
    loss = jnp.sum(jnp.where(ignore[:, None], 0.0, -weight * log_prob)) / denom
    return loss


if __name__ == "__main__":
    B, T, V = 2, 8, 32
    ignore_index = 0
    alpha = 0.1
    normalize_length = True

    key = jax.random.PRNGKey(0)
    k1, k2, k3 = jax.random.split(key, 3)

    logits = jax.random.normal(k1, (B, T, V), dtype=jnp.float32)
    target = jax.random.randint(k2, (B, T), 1, V, dtype=jnp.int32)
    # pad the tails so the "ignore" count (the denominator) is non-zero
    target = target.at[0, 6:].set(ignore_index)
    target = target.at[1, 5:].set(ignore_index)

    # TODO(synk): `labels` is a host-side list-of-lists; only its per-example
    # lengths feed the math, so lengths are computed in Python here.
    labels = [[1, 2, 3, 4, 5, 6], [7, 8, 9, 10, 11]]
    labels_lengths = jnp.array([len(l) for l in labels], dtype=jnp.float32)

    # Deterministic synthetic "matric" parameter: (V+1, V+1, V+1) then the
    # module's [:-1, :-1, :-1] slice -> (V, V, V). Small positive values so the
    # pairwise smoothing mass per row stays well below 1.
    matric_full = jax.random.uniform(
        k3, (V + 1, V + 1, V + 1), dtype=jnp.float32, minval=0.0, maxval=0.02)
    matric = matric_full[:-1, :-1, :-1]

    loss = pairwise_weight_smooth_loss(
        logits, target, labels_lengths, matric,
        ignore_index=ignore_index, alpha=alpha,
        normalize_length=normalize_length)
    loss = jax.block_until_ready(loss)

    ref = reference_loss(
        logits, target, labels_lengths, matric,
        ignore_index=ignore_index, alpha=alpha,
        normalize_length=normalize_length)
    ref = jax.block_until_ready(ref)

    err = abs(float(loss) - float(ref))
    assert err <= 1e-3 * max(1.0, abs(float(ref))), (float(loss), float(ref))
    print("KERNEL_OK")
</pallas_src>

<mosaic_0001>
module attributes {stable_mosaic.version = 11 : i64} {
  func.func @_pairwise_smooth_loss_kernel(%arg0: i32, %arg1: i32, %arg2: memref<16x128xf32, #tpu.memory_space<vmem>>, %arg3: memref<16x128xf32, #tpu.memory_space<vmem>>, %arg4: memref<16x3xf32, #tpu.memory_space<vmem>>, %arg5: memref<1x8x128xf32, #tpu.memory_space<vmem>>) attributes {dimension_semantics = [#tpu.dimension_semantics<parallel>, #tpu.dimension_semantics<arbitrary>], iteration_bounds = array<i64: 1, 1>, scalar_prefetch = 0 : i64, scratch_operands = 0 : i64, tpu.core_type = #tpu.core_type<tc>, window_params = [{transform_indices = @transform_0, window_bounds = array<i64: 16, 128>}, {transform_indices = @transform_1, window_bounds = array<i64: 16, 128>}, {transform_indices = @transform_2, window_bounds = array<i64: 16, 3>}, {transform_indices = @transform_3, window_bounds = array<i64: 1, 8, 128>}]} {
    %c0_i32 = arith.constant 0 : i32
    %0 = arith.cmpi eq, %arg1, %c0_i32 : i32
    %1 = arith.extui %0 : i1 to i32
    %c0_i32_0 = arith.constant 0 : i32
    %2 = arith.cmpi ne, %1, %c0_i32_0 : i32
    scf.if %2 {
      %cst_19 = arith.constant 0.000000e+00 : f32
      %44 = vector.broadcast %cst_19 : f32 to vector<8x128xf32>
      %c0_20 = arith.constant 0 : index
      %c0_21 = arith.constant 0 : index
      %c0_22 = arith.constant 0 : index
      %45 = vector.load %arg5[%c0_20, %c0_21, %c0_22] : memref<1x8x128xf32, #tpu.memory_space<vmem>>, vector<1x8x128xf32>
      %46 = vector.shape_cast %45 : vector<1x8x128xf32> to vector<8x128xf32>
      %47 = vector.shape_cast %44 : vector<8x128xf32> to vector<1x8x128xf32>
      tpu.vector_store %arg5[%c0_20, %c0_21, %c0_22], %47 {strides = array<i32>} : memref<1x8x128xf32, #tpu.memory_space<vmem>>, vector<1x8x128xf32>,
    } else {
    }
    %c0 = arith.constant 0 : index
    %c0_1 = arith.constant 0 : index
    %3 = vector.load %arg2[%c0, %c0_1] : memref<16x128xf32, #tpu.memory_space<vmem>>, vector<16x128xf32>
    %cst = arith.constant dense<0xFF800000> : vector<16xf32>
    %4 = vector.multi_reduction <maximumf>, %3, %cst [1] : vector<16x128xf32> to vector<16xf32>
    %5 = vector.shape_cast %4 : vector<16xf32> to vector<16x1xf32>
    %6 = vector.broadcast %5 : vector<16x1xf32> to vector<16x128xf32>
    %7 = arith.subf %3, %6 : vector<16x128xf32>
    %8 = math.exp %7 : vector<16x128xf32>
    %cst_2 = arith.constant dense<0.000000e+00> : vector<16xf32>
    %9 = vector.multi_reduction <add>, %8, %cst_2 [1] : vector<16x128xf32> to vector<16xf32>
    %10 = vector.shape_cast %9 : vector<16xf32> to vector<16x1xf32>
    %11 = math.log %10 : vector<16x1xf32>
    %12 = vector.broadcast %11 : vector<16x1xf32> to vector<16x128xf32>
    %13 = arith.subf %7, %12 : vector<16x128xf32>
    %c0_3 = arith.constant 0 : index
    %c0_4 = arith.constant 0 : index
    %14 = vector.load %arg4[%c0_3, %c0_4] : memref<16x3xf32, #tpu.memory_space<vmem>>, vector<16x1xf32>
    %15 = arith.fptosi %14 : vector<16x1xf32> to vector<16x1xi32>
    %c0_5 = arith.constant 0 : index
    %c1 = arith.constant 1 : index
    %16 = vector.load %arg4[%c0_5, %c1] : memref<16x3xf32, #tpu.memory_space<vmem>>, vector<16x1xf32>
    %c0_6 = arith.constant 0 : index
    %c2 = arith.constant 2 : index
    %17 = vector.load %arg4[%c0_6, %c2] : memref<16x3xf32, #tpu.memory_space<vmem>>, vector<16x1xf32>
    %c0_7 = arith.constant 0 : index
    %c0_8 = arith.constant 0 : index
    %18 = vector.load %arg3[%c0_7, %c0_8] : memref<16x128xf32, #tpu.memory_space<vmem>>, vector<16x128xf32>
    %19 = vector.broadcast %16 : vector<16x1xf32> to vector<16x128xf32>
    %20 = arith.mulf %19, %18 : vector<16x128xf32>
    %cst_9 = arith.constant dense<0.000000e+00> : vector<16xf32>
    %21 = vector.multi_reduction <add>, %20, %cst_9 [1] : vector<16x128xf32> to vector<16xf32>
    %22 = vector.shape_cast %21 : vector<16xf32> to vector<16x1xf32>
    %cst_10 = arith.constant 1.000000e+00 : f32
    %23 = vector.broadcast %cst_10 : f32 to vector<16x1xf32>
    %24 = arith.subf %23, %22 : vector<16x1xf32>
    %25 = tpu.iota {dimensions = array<i32: 1>} : vector<16x128xi32>
    %26 = vector.broadcast %15 : vector<16x1xi32> to vector<16x128xi32>
    %27 = arith.cmpi eq, %25, %26 : vector<16x128xi32>
    %28 = vector.shape_cast %24 : vector<16x1xf32> to vector<16x1xf32>
    %29 = vector.broadcast %28 : vector<16x1xf32> to vector<16x128xf32>
    %30 = arith.select %27, %29, %20 : vector<16x128xi1>, vector<16x128xf32>
    %cst_11 = arith.constant 0.000000e+00 : f32
    %31 = vector.broadcast %cst_11 : f32 to vector<16x1xf32>
    %32 = arith.subf %31, %17 : vector<16x1xf32>
    %33 = vector.broadcast %32 : vector<16x1xf32> to vector<16x128xf32>
    %34 = arith.mulf %33, %30 : vector<16x128xf32>
    %35 = arith.mulf %34, %13 : vector<16x128xf32>
    %36 = vector.shape_cast %35 : vector<16x128xf32> to vector<2x8x128xf32>
    %cst_12 = arith.constant dense<0.000000e+00> : vector<8x128xf32>
    %37 = vector.multi_reduction <add>, %36, %cst_12 [0] : vector<2x8x128xf32> to vector<8x128xf32>
    %c0_13 = arith.constant 0 : index
    %c0_14 = arith.constant 0 : index
    %c0_15 = arith.constant 0 : index
    %38 = vector.load %arg5[%c0_13, %c0_14, %c0_15] : memref<1x8x128xf32, #tpu.memory_space<vmem>>, vector<1x8x128xf32>
    %39 = vector.shape_cast %38 : vector<1x8x128xf32> to vector<8x128xf32>
    %40 = arith.addf %39, %37 : vector<8x128xf32>
    %c0_16 = arith.constant 0 : index
    %c0_17 = arith.constant 0 : index
    %c0_18 = arith.constant 0 : index
    %41 = vector.load %arg5[%c0_16, %c0_17, %c0_18] : memref<1x8x128xf32, #tpu.memory_space<vmem>>, vector<1x8x128xf32>
    %42 = vector.shape_cast %41 : vector<1x8x128xf32> to vector<8x128xf32>
    %43 = vector.shape_cast %40 : vector<8x128xf32> to vector<1x8x128xf32>
    tpu.vector_store %arg5[%c0_16, %c0_17, %c0_18], %43 {strides = array<i32>} : memref<1x8x128xf32, #tpu.memory_space<vmem>>, vector<1x8x128xf32>,
    return
  }
  func.func @transform_0(%arg0: i32, %arg1: i32) -> (i32, i32) {
    %c1_i32 = arith.constant 1 : i32
    %0 = arith.muli %arg0, %c1_i32 : i32
    %1 = arith.addi %0, %arg1 : i32
    %c0_i32 = arith.constant 0 : i32
    %c0_i32_0 = arith.constant 0 : i32
    return %1, %c0_i32 : i32, i32
  }
  func.func @transform_1(%arg0: i32, %arg1: i32) -> (i32, i32) {
    %c1_i32 = arith.constant 1 : i32
    %0 = arith.muli %arg0, %c1_i32 : i32
    %1 = arith.addi %0, %arg1 : i32
    %c0_i32 = arith.constant 0 : i32
    %c0_i32_0 = arith.constant 0 : i32
    return %1, %c0_i32 : i32, i32
  }
  func.func @transform_2(%arg0: i32, %arg1: i32) -> (i32, i32) {
    %c1_i32 = arith.constant 1 : i32
    %0 = arith.muli %arg0, %c1_i32 : i32
    %1 = arith.addi %0, %arg1 : i32
    %c0_i32 = arith.constant 0 : i32
    %c0_i32_0 = arith.constant 0 : i32
    return %1, %c0_i32 : i32, i32
  }
  func.func @transform_3(%arg0: i32, %arg1: i32) -> (i32, i32, i32) {
    %c0_i32 = arith.constant 0 : i32
    %c0_i32_0 = arith.constant 0 : i32
    %c0_i32_1 = arith.constant 0 : i32
    return %arg0, %c0_i32, %c0_i32_0 : i32, i32, i32
  }
}

</mosaic_0001>

<llo_original>
// kernel: tpu_custom_call.1
$region0: #{tpu_custom_call.1}
  #allocation0 [shape = 'u32[]', space=smem, size = 0x4, offset = 0x4, fixed_abs, tag = 'smem constant byte address 0x4 - core index']
  #allocation1 [shape = 'u32[144,128]{1,0:T(1,128)}', space=vmem, size = 0x12000, scoped, tag = 'internal scratch']
  %s0 = inlined_call_operand.vmem [shape: f32[16,128], index: 0, kind: input, shape index: {}]
  %s1 = inlined_call_operand.hbm [shape: f32[16,128], index: 1, kind: input, shape index: {}]
  %s2 = inlined_call_operand.vmem [shape: f32[16,3], index: 2, kind: input, shape index: {}]
  %s3 = inlined_call_operand.hbm [shape: f32[1,8,128], index: 3, kind: output, shape index: {}]
  %s4 = sld [smem:[#allocation0]]
  $region30: #{tpu_custom_call.1} parent=0
    _
  %s6 = ssub.s32 1, %s4
  %s7 = scalar_select 0, %s6, %s4
  $region1: #{tpu_custom_call.1} parent=0
    #allocation2 [shape = 'u8[8192]{0}', space=vmem, size = 0x2000, scoped, tag = 'input window, operand 1, single buffered']
    #allocation3 [shape = 's32[1]{0}', space=sflag, size = 0x4, scoped, tag = 'scoped memory for tpu_custom_call.1']
    #allocation4 [shape = 's32[1]{0}', space=sflag, size = 0x4, scoped, tag = 'scoped memory for tpu_custom_call.1']
    #allocation5 [shape = 'u8[4096]{0}', space=vmem, size = 0x1000, scoped, tag = 'output window, operand 0, single buffered']
    %8 = vsyncpa [#allocation3], 0
    %9 = vsyncpa [#allocation4], 0
    // Predicated region
    $region2: #{tpu_custom_call.1} parent=1 // pred_check
      _
    $region3: #{tpu_custom_call.1} parent=1 // pred_check_branch
      %11 = sbr.rel (0) target = $region5
    $region4: #{tpu_custom_call.1} parent=1 // pred_region
      %s12 = sadd.s32 0, 0
      %s13 = smul.u32 2, %s12
      %p14 = scmp.lt.s32.totalorder %s13, 1
      %s15 = scalar_select %p14, %s13, 1
      %s16 = smul.addr %s15, 8
      %s17 = scalar_lea.vmem %s0, %s16
      %s18 = sadd.s32 0, 0
      %s19 = smul.u32 2, %s18
    $region5: #{tpu_custom_call.1} parent=1 // pred_fallthru
      _
    // Predicated region
    $region6: #{tpu_custom_call.1} parent=1 // pred_check
      _
    $region7: #{tpu_custom_call.1} parent=1 // pred_check_branch
      %21 = sbr.rel (0) target = $region9
    $region8: #{tpu_custom_call.1} parent=1 // pred_region
      %s22 = sadd.s32 0, 0
      %s23 = smul.u32 2, %s22
      %s25 = ssub.s32 256, 256
      %26 = vsyncadd [#allocation3], %s25
      %s27 = smul.addr %s23, 128
      %s28 = scalar_lea.hbm %s1, %s27
      %s29 = sshll.u32 [#allocation2], 4
      %s30 = int_to_ptr.vmem [resolvable:$true] %s29
      %35 = dma.hbm_to_vmem [thread:$0]  %s28, 256, %s30, [#allocation3], 128, 128, 8
    $region9: #{tpu_custom_call.1} parent=1 // pred_fallthru
      _
    // Predicated region
    $region10: #{tpu_custom_call.1} parent=1 // pred_check
      _
    $region11: #{tpu_custom_call.1} parent=1 // pred_check_branch
      %37 = sbr.rel (0) target = $region13
    $region12: #{tpu_custom_call.1} parent=1 // pred_region
      %s38 = sadd.s32 0, 0
      %s39 = smul.u32 2, %s38
      %p40 = scmp.lt.s32.totalorder %s39, 1
      %s41 = scalar_select %p40, %s39, 1
      %s42 = smul.addr %s41, 8
      %s43 = scalar_lea.vmem %s2, %s42
      %s44 = sadd.s32 0, 0
      %s45 = smul.u32 2, %s44
    $region13: #{tpu_custom_call.1} parent=1 // pred_fallthru
      _
    // Predicated region
    $region14: #{tpu_custom_call.1} parent=1 // pred_check
      _
    $region15: #{tpu_custom_call.1} parent=1 // pred_check_branch
      %47 = sbr.rel (0) target = $region17
    $region16: #{tpu_custom_call.1} parent=1 // pred_region
      %48 = dma.done [#allocation3], 256
    $region17: #{tpu_custom_call.1} parent=1 // pred_fallthru
      _
    %s49 = sadd.s32 0, 0
    %s50 = smul.u32 2, %s49
    %p51 = scmp.lt.s32.totalorder %s50, 1
    %s52 = scalar_select %p51, %s50, 1
    %s53 = smul.addr %s52, 8
    %s54 = scalar_lea.vmem %s0, %s53
    %s55 = sadd.s32 0, 0
    %s56 = smul.u32 2, %s55
    %p57 = scmp.lt.s32.totalorder %s56, 1
    %s58 = scalar_select %p57, %s56, 1
    %s59 = smul.addr %s58, 8
    %s60 = scalar_lea.vmem %s2, %s59
    %s61 = sadd.s32 0, 0
    %s62 = smul.u32 2, %s61
    %p63 = scmp.lt.s32.totalorder %s62, 1
    %s64 = scalar_select %p63, %s62, 1
    %s65 = smul.addr %s64, 8
    %s66 = scalar_lea.vmem %s0, %s65
    %s67 = sadd.s32 0, 0
    %s68 = smul.u32 2, %s67
    %s69 = sadd.s32 0, 0
    %s70 = smul.u32 2, %s69
    %s71 = sadd.s32 0, 0
    %s72 = smul.u32 2, %s71
    %p73 = scmp.lt.s32.totalorder %s72, 1
    %s74 = scalar_select %p73, %s72, 1
    %s75 = smul.addr %s74, 8
    %s76 = scalar_lea.vmem %s2, %s75
    %s77 = sadd.s32 0, 0
    %s78 = smul.u32 2, %s77
    %p79 = scmp.eq.s32.totalorder 0, 0
    // Predicated region
    $region18: #{tpu_custom_call.1} parent=1 // pred_check
      %p80 = pneg %p79
    $region19: #{tpu_custom_call.1} parent=1 // pred_check_branch
      %82 = sbr.rel (%p80) target = $region21
    $region20: #{tpu_custom_call.1} parent=1 // pred_region
      %83 = vst [vmem:[#allocation5] sm:$0xff] 0.0
    $region21: #{tpu_custom_call.1} parent=1 // pred_fallthru
      _
    %v84 = vld [vmem:[%s66] sm:$0xff]
    %v85 = vld [vmem:[%s66 + $0x8] sm:$0xff]
    %86 = vmax.xlane.f32.xlu0 %v84
    %v87 = vpop.xlane.xlu0 %86
    %88 = vmax.xlane.f32.xlu0 %v85
    %v89 = vpop.xlane.xlu0 %88
    %v90 = vsub.f32 %v84, %v87
    %v91 = vsub.f32 %v85, %v89
    %v92 = vmul.f32 %v90, 1.442695
    %v93 = vpow.pop %v92
    %v94 = vmul.f32 %v91, 1.442695
    %v95 = vpow.pop %v94
    %96 = vadd.xlane.f32.xlu0 %v93
    %v97 = vpop.xlane.xlu0 %96
    %98 = vadd.xlane.f32.xlu0 %v95
    %v99 = vpop.xlane.xlu0 %98
    %v100 = vlog2.pop %v97
    %v101 = vmul.f32 %v100, 0.6931472
    %v102 = vlog2.pop %v99
    %v103 = vmul.f32 %v102, 0.6931472
    %v104 = vsub.f32 %v90, %v101
    %v105 = vsub.f32 %v91, %v103
    %v106 = vld [vmem:[%s76] sm:$0xff]
    %v107 = vld [vmem:[%s76 + $0x8] sm:$0xff]
    %v108 = vcvt.f32.s32.to.zero.pseudo %v106
    %v109 = vcvt.f32.s32.to.zero.pseudo %v107
    %v110 = vld [vmem:[#allocation2] sm:$0xff]
    %v111 = vld [vmem:[#allocation2 + $0x8] sm:$0xff]
    %113 = vset.pattern.permute.xlu0 1
    %114 = vperm.xlu0 %113, %v106
    %v115 = vpop.permute.xlu0 %114
    %118 = vset.pattern.permute.xlu0 1
    %119 = vperm.xlu0 %118, %v107
    %v120 = vpop.permute.xlu0 %119
    %v122 = vmul.f32 %v115, %v110
    %v123 = vmul.f32 %v120, %v111
    %124 = vadd.xlane.f32.xlu0 %v122
    %v125 = vpop.xlane.xlu0 %124
    %126 = vadd.xlane.f32.xlu0 %v123
    %v127 = vpop.xlane.xlu0 %126
    %v128 = vsub.f32 1.0, %v125
    %v129 = vsub.f32 1.0, %v127
    %v130 = vlaneseq
    %v131 = vand.u32 %v130, 127
    %132 = vset.pattern.permute.xlu0 0
    %133 = vperm.xlu0 %132, %v108
    %v134 = vpop.permute.xlu0 %133
    %135 = vset.pattern.permute.xlu0 0
    %136 = vperm.xlu0 %135, %v109
    %v137 = vpop.permute.xlu0 %136
    %vm138 = vcmp.eq.s32.totalorder %v131, %v134
    %vm139 = vcmp.eq.s32.totalorder %v131, %v137
    %v140 = vsel %vm138, %v128, %v122
    %v141 = vsel %vm139, %v129, %v123
    %v142 = vsub.f32 0.0, %v106
    %v143 = vsub.f32 0.0, %v107
    %145 = vset.pattern.permute.xlu0 2
    %146 = vperm.xlu0 %145, %v142
    %v147 = vpop.permute.xlu0 %146
    %150 = vset.pattern.permute.xlu0 2
    %151 = vperm.xlu0 %150, %v143
    %v152 = vpop.permute.xlu0 %151
    %v154 = vmul.f32 %v147, %v140
    %v155 = vmul.f32 %v152, %v141
    %v156 = vmul.f32 %v154, %v104
    %v157 = vmul.f32 %v155, %v105
    %v158 = vadd.f32 %v156, %v157
    %v159 = vld [vmem:[#allocation5] sm:$0xff]
    %v160 = vadd.f32 %v159, %v158
    %161 = vst [vmem:[#allocation5] sm:$0xff] %v160
    // Predicated region
    $region22: #{tpu_custom_call.1} parent=1 // pred_check
      _
    $region23: #{tpu_custom_call.1} parent=1 // pred_check_branch
      %163 = sbr.rel (0) target = $region25
    $region24: #{tpu_custom_call.1} parent=1 // pred_region
      %s165 = ssub.s32 128, 128
      %166 = vsyncadd [#allocation4], %s165
      %s168 = sshll.u32 [#allocation5], 4
      %s169 = int_to_ptr.vmem [resolvable:$true] %s168
      %171 = dma.vmem_to_hbm [thread:$0]  %s169, 128, %s3, [#allocation4]
    $region25: #{tpu_custom_call.1} parent=1 // pred_fallthru
      _
    // Predicated region
    $region26: #{tpu_custom_call.1} parent=1 // pred_check
      _
    $region27: #{tpu_custom_call.1} parent=1 // pred_check_branch
      %173 = sbr.rel (0) target = $region29
    $region28: #{tpu_custom_call.1} parent=1 // pred_region
      %174 = dma.done [#allocation4], 128
    $region29: #{tpu_custom_call.1} parent=1 // pred_fallthru
      _
    %175 = vsyncpa [#allocation3], 1
    %176 = vsyncpa [#allocation4], 1

</llo_original>
